<compile_context>
chip_gen: v6e
topology: v6e:2x2x1
jax: 0.10.0
libtpu: 0.0.40
codegen_flags: <defaults>
</compile_context>

<pallas_src>
import functools

import jax
import jax.numpy as jnp
from jax.experimental import pallas as pl
from jax.experimental.pallas import tpu as pltpu


# --------------------------------------------------------------------------
# Fused kernel.  Grid axis 0 walks class tiles (streaming softmax CE); the
# angular-prototypical term runs at k==0 (hidden under later weight DMAs) and
# finalization runs on the last grid step.
#   x_ref   : (M, D)   f32   embeddings, rows = [all utt0 ; all utt1], resident
#   w_ref   : (TC, D)  f32/bf16  classifier weight tile (streamed over classes)
#   b_ref   : (1, TC)  f32   classifier bias tile (padded lanes = -1e30)
#   lbl_ref : (M, 1)   i32   labels (label tiled twice, matching row order)
#   apw_ref : (1,)     f32   angleproto scale   (SMEM)
#   apb_ref : (1,)     f32   angleproto offset  (SMEM)
# outputs:
#   loss_ref : (1, 1)  f32   nlossS + nlossP
#   prec_ref : (1, 1)  f32   top-1 accuracy in percent
# scratch (VMEM, persistent across the class-tile grid):
#   m_sc, l_sc, lab_sc : (M, 1) f32  running max / sum-exp / label logit
#   lossp_sc           : (1, 1) f32  angular-prototypical loss (from k==0)
# --------------------------------------------------------------------------
def _fused_loss_kernel(x_ref, w_ref, b_ref, lbl_ref, apw_ref, apb_ref,
                       loss_ref, prec_ref,
                       m_sc, l_sc, lab_sc, lossp_sc,
                       *, n_spk):
    k = pl.program_id(0)
    nk = pl.num_programs(0)
    m_rows = 2 * n_spk

    @pl.when(k == 0)
    def _init():
        m_sc[...] = jnp.full_like(m_sc, -jnp.inf)
        l_sc[...] = jnp.zeros_like(l_sc)
        lab_sc[...] = jnp.zeros_like(lab_sc)

        # ---- angular prototypical (nPerSpeaker == 2), hoisted to k==0 so it
        # overlaps with the remaining streamed weight-tile DMAs. -------------
        # Rows [0:N) are utterance 0 (positives); rows [N:2N) are utterance 1
        # (the anchor mean over a single utterance is just that utterance).
        # TODO(synk): a real mean over utterances 1..P-1 is needed for P > 2.
        pos = x_ref[pl.ds(0, n_spk), :]                      # (N, D)
        anc = x_ref[pl.ds(n_spk, n_spk), :]                  # (N, D)
        inv_pn = 1.0 / jnp.maximum(
            jnp.sqrt(jnp.sum(pos * pos, axis=-1, keepdims=True)), 1e-8)
        inv_an = 1.0 / jnp.maximum(
            jnp.sqrt(jnp.sum(anc * anc, axis=-1, keepdims=True)), 1e-8)
        # Normalize before the matmul: cosine matrix in one MXU pass.
        cos = jax.lax.dot_general(
            pos * inv_pn, anc * inv_an, (((1,), (1,)), ((), ())),
            preferred_element_type=jnp.float32)              # (N, N)
        scores = cos * apw_ref[0] + apb_ref[0]

        rmax = jnp.max(scores, axis=-1, keepdims=True)
        lse_p = rmax + jnp.log(jnp.sum(jnp.exp(scores - rmax),
                                       axis=-1, keepdims=True))
        rows = jax.lax.broadcasted_iota(jnp.int32, (n_spk, n_spk), 0)
        cols = jax.lax.broadcasted_iota(jnp.int32, (n_spk, n_spk), 1)
        diag = jnp.sum(jnp.where(rows == cols, scores, 0.0),
                       axis=-1, keepdims=True)               # (N, 1)
        lossp_sc[...] = jnp.sum(lse_p - diag, keepdims=True) / n_spk  # (1, 1)

    # ---- streamed softmax CE over one class tile ---------------------------
    x = x_ref[...]                                           # (M, D) f32
    w = w_ref[...]                                           # (TC, D)
    lhs = x.astype(w.dtype)                                  # bf16 stream: cast activations
    # Contract the D axis of both operands directly (no weight transpose).
    logits = jax.lax.dot_general(
        lhs, w, (((1,), (1,)), ((), ())),
        preferred_element_type=jnp.float32) + b_ref[...]     # (M, TC) f32
    # Padded classes carry bias -1e30 (weights 0), so no masking needed here.

    tc = logits.shape[1]
    col = jax.lax.broadcasted_iota(jnp.int32, (m_rows, tc), 1) + k * tc
    is_lab = col == lbl_ref[...]                             # (M, TC) vs (M, 1)
    lab_sc[...] += jnp.sum(jnp.where(is_lab, logits, 0.0),
                           axis=-1, keepdims=True)

    # Online (streaming) softmax statistics.
    m_new = jnp.maximum(m_sc[...], jnp.max(logits, axis=-1, keepdims=True))
    l_sc[...] = (l_sc[...] * jnp.exp(m_sc[...] - m_new)
                 + jnp.sum(jnp.exp(logits - m_new), axis=-1, keepdims=True))
    m_sc[...] = m_new

    @pl.when(k == nk - 1)
    def _finalize():
        # ---- softmax cross-entropy + top-1 precision ------------------------
        lse = m_sc[...] + jnp.log(l_sc[...])                 # (M, 1)
        loss_s = jnp.sum(lse - lab_sc[...], keepdims=True) / m_rows   # (1, 1)
        # TODO(synk): counts ties as correct; torch argmax picks the first max
        #             (identical for continuous f32 logits).
        correct = jnp.sum((lab_sc[...] >= m_sc[...]).astype(jnp.float32),
                          keepdims=True)                     # (1, 1)
        prec_ref[...] = correct * (100.0 / m_rows)
        loss_ref[...] = loss_s + lossp_sc[...]


# --------------------------------------------------------------------------
# Wrapper (glue: row reorder, label tiling, class-dim padding, tile choice)
# --------------------------------------------------------------------------
def loss_forward(x, label, fc_weight, fc_bias, ap_w, ap_b, *,
                 class_tile=None, weight_dtype=jnp.float32,
                 vmem_budget_bytes=None):
    N, n_per, D = x.shape
    assert n_per == 2
    M = 2 * N
    C = fc_weight.shape[0]
    LANE = 128
    w_bytes = jnp.dtype(weight_dtype).itemsize

    # Row layout: [all utterance-0 rows ; all utterance-1 rows] so the
    # angleproto pos/anc slices are contiguous (no stride-2 sublane gathers).
    # CE loss and precision are invariant to this row permutation.
    x_flat = jnp.concatenate([x[:, 0, :], x[:, 1, :]], axis=0).astype(jnp.float32)
    lbl = jnp.tile(label.astype(jnp.int32), 2).reshape(M, 1)

    # --- per-generation VMEM budget & class tile -----------------------------
    if vmem_budget_bytes is None:
        try:
            vmem_physical = pltpu.get_tpu_info().vmem_capacity_bytes
        except Exception:
            vmem_physical = 64 * 1024 * 1024       # v7x per-core size: safe floor
        vmem_budget_bytes = vmem_physical // 2     # headroom for compiler temps
    vmem_budget_bytes = int(vmem_budget_bytes)

    if class_tile is None:
        # resident: x (double-buffered) + labels (lane-padded, double-buffered)
        resident = 2 * M * D * 4 + 2 * M * LANE * 4
        # per unit of tc: weight double-buffer + logits & elementwise temps
        per_tc = 2 * D * w_bytes + 3 * M * 4
        tc = (vmem_budget_bytes - resident) // max(per_tc, 1)
        tc = max(LANE, min(4096, (tc // LANE) * LANE))
        tc = min(tc, ((C + LANE - 1) // LANE) * LANE)   # no point exceeding padded C
        class_tile = int(tc)
    tc = class_tile
    assert tc % LANE == 0, "class_tile must be a multiple of 128"

    # Pad classes UP to a multiple of the chosen tile (padding is free: padded
    # weight rows are zero and padded bias lanes are a large negative, so those
    # logits never contribute -> no per-step masking in the hot loop).
    c_pad = ((C + tc - 1) // tc) * tc
    w = fc_weight.astype(weight_dtype)                 # (C, D) -- no transpose
    b = fc_bias.reshape(1, C).astype(jnp.float32)
    if c_pad != C:
        w = jnp.pad(w, ((0, c_pad - C), (0, 0)))
        b = jnp.pad(b, ((0, 0), (0, c_pad - C)), constant_values=-1e30)
    grid = (c_pad // tc,)

    cost = pl.CostEstimate(
        flops=int(2 * M * c_pad * D + 2 * N * N * D),
        transcendentals=int(M * c_pad + N * N),
        bytes_accessed=int(c_pad * D * w_bytes + M * D * 4 + c_pad * 4 + M * 4 + 8),
    )

    kernel = functools.partial(_fused_loss_kernel, n_spk=N)
    loss, prec = pl.pallas_call(
        kernel,
        out_shape=(jax.ShapeDtypeStruct((1, 1), jnp.float32),
                   jax.ShapeDtypeStruct((1, 1), jnp.float32)),
        grid_spec=pltpu.PrefetchScalarGridSpec(
            num_scalar_prefetch=0,
            grid=grid,
            in_specs=[
                pl.BlockSpec((M, D), lambda k: (0, 0)),     # x, kept resident
                pl.BlockSpec((tc, D), lambda k: (k, 0)),    # streamed weight tile
                pl.BlockSpec((1, tc), lambda k: (0, k)),    # bias tile
                pl.BlockSpec((M, 1), lambda k: (0, 0)),     # labels
                pl.BlockSpec(memory_space=pltpu.MemorySpace.SMEM),  # angleproto w
                pl.BlockSpec(memory_space=pltpu.MemorySpace.SMEM),  # angleproto b
            ],
            out_specs=(pl.BlockSpec((1, 1), lambda k: (0, 0)),
                       pl.BlockSpec((1, 1), lambda k: (0, 0))),
            scratch_shapes=[pltpu.VMEM((M, 1), jnp.float32),   # running max
                            pltpu.VMEM((M, 1), jnp.float32),   # running sum-exp
                            pltpu.VMEM((M, 1), jnp.float32),   # label logit
                            pltpu.VMEM((1, 1), jnp.float32)],  # angleproto loss
        ),
        compiler_params=pltpu.CompilerParams(
            # class axis is a reduction (accumulators live across it)
            dimension_semantics=("arbitrary",),
            vmem_limit_bytes=vmem_budget_bytes),
        cost_estimate=cost,
    )(x_flat, w, b, lbl,
      ap_w.reshape(1).astype(jnp.float32),
      ap_b.reshape(1).astype(jnp.float32))
    return loss[0, 0], prec[0, 0]


# --------------------------------------------------------------------------
# Pure-JAX reference for verification
# --------------------------------------------------------------------------
def reference(x, label, fc_weight, fc_bias, ap_w, ap_b,
              logits_dtype=jnp.float32):
    N, _, D = x.shape
    xf = x.reshape(-1, D)
    lbl = jnp.repeat(label, 2)
    logits = jnp.dot(xf.astype(logits_dtype),
                     fc_weight.astype(logits_dtype).T,
                     preferred_element_type=jnp.float32) + fc_bias
    logp = jax.nn.log_softmax(logits, axis=-1)
    nlossS = -jnp.mean(logp[jnp.arange(xf.shape[0]), lbl])
    pred = jnp.argmax(logits, axis=-1)
    prec1 = 100.0 * jnp.mean((pred == lbl).astype(jnp.float32))

    pos = x[:, 0, :]
    anc = jnp.mean(x[:, 1:, :], axis=1)
    pn = jnp.linalg.norm(pos, axis=-1)
    an = jnp.linalg.norm(anc, axis=-1)
    cos = (pos @ anc.T) / jnp.maximum(pn[:, None] * an[None, :], 1e-8)
    scores = cos * ap_w + ap_b
    logp2 = jax.nn.log_softmax(scores, axis=-1)
    nlossP = -jnp.mean(jnp.diag(logp2))
    return nlossS + nlossP, prec1


if __name__ == "__main__":
    # Small shapes: N=16 speaker pairs (M=32 rows), D=64, C=300 classes.
    N, D, C = 16, 64, 300
    key = jax.random.PRNGKey(0)
    kx, kl, kw, kb = jax.random.split(key, 4)

    x = jax.random.normal(kx, (N, 2, D), dtype=jnp.float32)
    label = jax.random.randint(kl, (N,), 0, C, dtype=jnp.int32)

    # Deterministic parameter init (stand-in for the torch.load'ed checkpoint)
    bound = 1.0 / (D ** 0.5)
    fc_weight = jax.random.uniform(kw, (C, D), jnp.float32, -bound, bound)
    fc_bias = jax.random.uniform(kb, (C,), jnp.float32, -bound, bound)
    ap_w = jnp.array(10.0, dtype=jnp.float32)          # angleproto init_w
    ap_b = jnp.array(-5.0, dtype=jnp.float32)          # angleproto init_b

    ref_loss, ref_prec1 = reference(x, label, fc_weight, fc_bias, ap_w, ap_b)

    # 1) f32 weights, budget-chosen (single) class tile.
    loss1, prec1 = loss_forward(x, label, fc_weight, fc_bias, ap_w, ap_b)
    jax.block_until_ready((loss1, prec1))
    assert jnp.allclose(loss1, ref_loss, rtol=1e-4, atol=1e-3), (loss1, ref_loss)
    assert jnp.allclose(prec1, ref_prec1, rtol=1e-4, atol=1e-3), (prec1, ref_prec1)

    # 2) f32 weights, forced small tile -> C=300 pads to 384 = 3 tiles of 128,
    #    exercising the multi-step streaming online-softmax + padded-bias path.
    loss2, prec2 = loss_forward(x, label, fc_weight, fc_bias, ap_w, ap_b,
                                class_tile=128)
    jax.block_until_ready((loss2, prec2))
    assert jnp.allclose(loss2, ref_loss, rtol=1e-4, atol=1e-3), (loss2, ref_loss)
    assert jnp.allclose(prec2, ref_prec1, rtol=1e-4, atol=1e-3), (prec2, ref_prec1)

    # 3) bf16 weight streaming (f32 MXU accumulation) vs a bf16-matmul reference.
    loss3, prec3 = loss_forward(x, label, fc_weight, fc_bias, ap_w, ap_b,
                                weight_dtype=jnp.bfloat16)
    jax.block_until_ready((loss3, prec3))
    rl3, rp3 = reference(x, label, fc_weight, fc_bias, ap_w, ap_b,
                         logits_dtype=jnp.bfloat16)
    assert jnp.allclose(loss3, rl3, rtol=1e-3, atol=5e-3), (loss3, rl3)
    assert jnp.allclose(prec3, rp3, rtol=1e-3, atol=1e-2), (prec3, rp3)

    print("KERNEL_OK")
</pallas_src>

<mosaic_0001>
module attributes {stable_mosaic.version = 11 : i64} {
  func.func @_fused_loss_kernel(%arg0: i32, %arg1: memref<32x64xf32, #tpu.memory_space<vmem>>, %arg2: memref<384x64xf32, #tpu.memory_space<vmem>>, %arg3: memref<1x384xf32, #tpu.memory_space<vmem>>, %arg4: memref<32x1xi32, #tpu.memory_space<vmem>>, %arg5: memref<1xf32, #tpu.memory_space<smem>>, %arg6: memref<1xf32, #tpu.memory_space<smem>>, %arg7: memref<1x1xf32, #tpu.memory_space<vmem>>, %arg8: memref<1x1xf32, #tpu.memory_space<vmem>>, %arg9: memref<32x1xf32, #tpu.memory_space<vmem>>, %arg10: memref<32x1xf32, #tpu.memory_space<vmem>>, %arg11: memref<32x1xf32, #tpu.memory_space<vmem>>, %arg12: memref<1x1xf32, #tpu.memory_space<vmem>>) attributes {dimension_semantics = [#tpu.dimension_semantics<arbitrary>], iteration_bounds = array<i64: 1>, scalar_prefetch = 0 : i64, scratch_operands = 4 : i64, tpu.core_type = #tpu.core_type<tc>, window_params = [{pipeline_mode = #tpu.pipeline_mode<synchronous>, transform_indices = @transform_0, window_bounds = array<i64: 32, 64>}, {transform_indices = @transform_1, window_bounds = array<i64: 384, 64>}, {transform_indices = @transform_2, window_bounds = array<i64: 1, 384>}, {pipeline_mode = #tpu.pipeline_mode<synchronous>, transform_indices = @transform_3, window_bounds = array<i64: 32, 1>}, {transform_indices = @transform_4, window_bounds = array<i64: 1>}, {transform_indices = @transform_5, window_bounds = array<i64: 1>}, {pipeline_mode = #tpu.pipeline_mode<synchronous>, transform_indices = @transform_6, window_bounds = array<i64: 1, 1>}, {pipeline_mode = #tpu.pipeline_mode<synchronous>, transform_indices = @transform_7, window_bounds = array<i64: 1, 1>}]} {
    %c0_i32 = arith.constant 0 : i32
    %0 = arith.cmpi eq, %arg0, %c0_i32 : i32
    %1 = arith.extui %0 : i1 to i32
    %c0_i32_0 = arith.constant 0 : i32
    %2 = arith.cmpi ne, %1, %c0_i32_0 : i32
    scf.if %2 {
      %cst_28 = arith.constant 0xFF800000 : f32
      %43 = vector.broadcast %cst_28 : f32 to vector<32x1xf32>
      %c0_29 = arith.constant 0 : index
      %c0_30 = arith.constant 0 : index
      %44 = vector.load %arg9[%c0_29, %c0_30] : memref<32x1xf32, #tpu.memory_space<vmem>>, vector<32x1xf32>
      tpu.vector_store %arg9[%c0_29, %c0_30], %43 {strides = array<i32>} : memref<32x1xf32, #tpu.memory_space<vmem>>, vector<32x1xf32>,
      %cst_31 = arith.constant 0.000000e+00 : f32
      %45 = vector.broadcast %cst_31 : f32 to vector<32x1xf32>
      %c0_32 = arith.constant 0 : index
      %c0_33 = arith.constant 0 : index
      %46 = vector.load %arg10[%c0_32, %c0_33] : memref<32x1xf32, #tpu.memory_space<vmem>>, vector<32x1xf32>
      tpu.vector_store %arg10[%c0_32, %c0_33], %45 {strides = array<i32>} : memref<32x1xf32, #tpu.memory_space<vmem>>, vector<32x1xf32>,
      %cst_34 = arith.constant 0.000000e+00 : f32
      %47 = vector.broadcast %cst_34 : f32 to vector<32x1xf32>
      %c0_35 = arith.constant 0 : index
      %c0_36 = arith.constant 0 : index
      %48 = vector.load %arg11[%c0_35, %c0_36] : memref<32x1xf32, #tpu.memory_space<vmem>>, vector<32x1xf32>
      tpu.vector_store %arg11[%c0_35, %c0_36], %47 {strides = array<i32>} : memref<32x1xf32, #tpu.memory_space<vmem>>, vector<32x1xf32>,
      %c0_37 = arith.constant 0 : index
      %c0_38 = arith.constant 0 : index
      %49 = vector.load %arg1[%c0_37, %c0_38] : memref<32x64xf32, #tpu.memory_space<vmem>>, vector<16x64xf32>
      %c16 = arith.constant 16 : index
      %c0_39 = arith.constant 0 : index
      %50 = vector.load %arg1[%c16, %c0_39] : memref<32x64xf32, #tpu.memory_space<vmem>>, vector<16x64xf32>
      %51 = arith.mulf %49, %49 : vector<16x64xf32>
      %cst_40 = arith.constant dense<0.000000e+00> : vector<16xf32>
      %52 = vector.multi_reduction <add>, %51, %cst_40 [1] : vector<16x64xf32> to vector<16xf32>
      %53 = vector.shape_cast %52 : vector<16xf32> to vector<16x1xf32>
      %54 = math.sqrt %53 : vector<16x1xf32>
      %cst_41 = arith.constant 9.99999993E-9 : f32
      %55 = vector.broadcast %cst_41 : f32 to vector<16x1xf32>
      %56 = arith.maximumf %54, %55 : vector<16x1xf32>
      %cst_42 = arith.constant 1.000000e+00 : f32
      %57 = vector.broadcast %cst_42 : f32 to vector<16x1xf32>
      %58 = arith.divf %57, %56 : vector<16x1xf32>
      %59 = arith.mulf %50, %50 : vector<16x64xf32>
      %cst_43 = arith.constant dense<0.000000e+00> : vector<16xf32>
      %60 = vector.multi_reduction <add>, %59, %cst_43 [1] : vector<16x64xf32> to vector<16xf32>
      %61 = vector.shape_cast %60 : vector<16xf32> to vector<16x1xf32>
      %62 = math.sqrt %61 : vector<16x1xf32>
      %cst_44 = arith.constant 9.99999993E-9 : f32
      %63 = vector.broadcast %cst_44 : f32 to vector<16x1xf32>
      %64 = arith.maximumf %62, %63 : vector<16x1xf32>
      %cst_45 = arith.constant 1.000000e+00 : f32
      %65 = vector.broadcast %cst_45 : f32 to vector<16x1xf32>
      %66 = arith.divf %65, %64 : vector<16x1xf32>
      %67 = vector.broadcast %58 : vector<16x1xf32> to vector<16x64xf32>
      %68 = arith.mulf %49, %67 : vector<16x64xf32>
      %69 = vector.broadcast %66 : vector<16x1xf32> to vector<16x64xf32>
      %70 = arith.mulf %50, %69 : vector<16x64xf32>
      %cst_46 = arith.constant dense<0.000000e+00> : vector<16x16xf32>
      %71 = tpu.matmul %68, %70, %cst_46 {dimension_numbers = #tpu.dot_dimension_numbers<[1], [1], [0], [0], [0, 0, 1, 0], [], []>} : vector<16x64xf32>, vector<16x64xf32>, vector<16x16xf32> -> vector<16x16xf32>
      %c0_47 = arith.constant 0 : index
      %72 = memref.load %arg5[%c0_47] : memref<1xf32, #tpu.memory_space<smem>>
      %73 = vector.broadcast %72 : f32 to vector<16x16xf32>
      %74 = arith.mulf %71, %73 : vector<16x16xf32>
      %c0_48 = arith.constant 0 : index
      %75 = memref.load %arg6[%c0_48] : memref<1xf32, #tpu.memory_space<smem>>
      %76 = vector.broadcast %75 : f32 to vector<16x16xf32>
      %77 = arith.addf %74, %76 : vector<16x16xf32>
      %cst_49 = arith.constant dense<0xFF800000> : vector<16xf32>
      %78 = vector.multi_reduction <maximumf>, %77, %cst_49 [1] : vector<16x16xf32> to vector<16xf32>
      %79 = vector.shape_cast %78 : vector<16xf32> to vector<16x1xf32>
      %80 = vector.broadcast %79 : vector<16x1xf32> to vector<16x16xf32>
      %81 = arith.subf %77, %80 : vector<16x16xf32>
      %82 = math.exp %81 : vector<16x16xf32>
      %cst_50 = arith.constant dense<0.000000e+00> : vector<16xf32>
      %83 = vector.multi_reduction <add>, %82, %cst_50 [1] : vector<16x16xf32> to vector<16xf32>
      %84 = vector.shape_cast %83 : vector<16xf32> to vector<16x1xf32>
      %85 = math.log %84 : vector<16x1xf32>
      %86 = arith.addf %79, %85 : vector<16x1xf32>
      %87 = tpu.iota {dimensions = array<i32: 0>} : vector<16x16xi32>
      %88 = tpu.iota {dimensions = array<i32: 1>} : vector<16x16xi32>
      %89 = arith.cmpi eq, %87, %88 : vector<16x16xi32>
      %cst_51 = arith.constant 0.000000e+00 : f32
      %90 = vector.broadcast %cst_51 : f32 to vector<16x16xf32>
      %91 = arith.select %89, %77, %90 : vector<16x16xi1>, vector<16x16xf32>
      %cst_52 = arith.constant dense<0.000000e+00> : vector<16xf32>
      %92 = vector.multi_reduction <add>, %91, %cst_52 [1] : vector<16x16xf32> to vector<16xf32>
      %93 = vector.shape_cast %92 : vector<16xf32> to vector<16x1xf32>
      %94 = arith.subf %86, %93 : vector<16x1xf32>
      %95 = vector.shape_cast %94 : vector<16x1xf32> to vector<1x16x1xf32>
      %cst_53 = arith.constant dense<0.000000e+00> : vector<1xf32>
      %96 = vector.multi_reduction <add>, %95, %cst_53 [1, 2] : vector<1x16x1xf32> to vector<1xf32>
      %97 = vector.shape_cast %96 : vector<1xf32> to vector<1x1x1xf32>
      %98 = vector.extract %97[0, 0, 0] : f32 from vector<1x1x1xf32>
      %99 = vector.broadcast %98 : f32 to vector<1x1xf32>
      %cst_54 = arith.constant 1.600000e+01 : f32
      %100 = vector.broadcast %cst_54 : f32 to vector<1x1xf32>
      %101 = arith.divf %99, %100 : vector<1x1xf32>
      %c0_55 = arith.constant 0 : index
      %c0_56 = arith.constant 0 : index
      %102 = vector.load %arg12[%c0_55, %c0_56] : memref<1x1xf32, #tpu.memory_space<vmem>>, vector<1x1xf32>
      tpu.vector_store %arg12[%c0_55, %c0_56], %101 {strides = array<i32>} : memref<1x1xf32, #tpu.memory_space<vmem>>, vector<1x1xf32>,
    } else {
    }
    %c0 = arith.constant 0 : index
    %c0_1 = arith.constant 0 : index
    %3 = vector.load %arg1[%c0, %c0_1] : memref<32x64xf32, #tpu.memory_space<vmem>>, vector<32x64xf32>
    %c0_2 = arith.constant 0 : index
    %c0_3 = arith.constant 0 : index
    %4 = vector.load %arg2[%c0_2, %c0_3] : memref<384x64xf32, #tpu.memory_space<vmem>>, vector<384x64xf32>
    %cst = arith.constant dense<0.000000e+00> : vector<32x384xf32>
    %5 = tpu.matmul %3, %4, %cst {dimension_numbers = #tpu.dot_dimension_numbers<[1], [1], [0], [0], [0, 0, 1, 0], [], []>} : vector<32x64xf32>, vector<384x64xf32>, vector<32x384xf32> -> vector<32x384xf32>
    %c0_4 = arith.constant 0 : index
    %c0_5 = arith.constant 0 : index
    %6 = vector.load %arg3[%c0_4, %c0_5] : memref<1x384xf32, #tpu.memory_space<vmem>>, vector<1x384xf32>
    %7 = vector.broadcast %6 : vector<1x384xf32> to vector<32x384xf32>
    %8 = arith.addf %5, %7 : vector<32x384xf32>
    %9 = tpu.iota {dimensions = array<i32: 1>} : vector<32x384xi32>
    %c384_i32 = arith.constant 384 : i32
    %10 = arith.muli %arg0, %c384_i32 : i32
    %11 = vector.broadcast %10 : i32 to vector<32x384xi32>
    %12 = arith.addi %9, %11 : vector<32x384xi32>
    %c0_6 = arith.constant 0 : index
    %c0_7 = arith.constant 0 : index
    %13 = vector.load %arg4[%c0_6, %c0_7] : memref<32x1xi32, #tpu.memory_space<vmem>>, vector<32x1xi32>
    %14 = vector.broadcast %13 : vector<32x1xi32> to vector<32x384xi32>
    %15 = arith.cmpi eq, %12, %14 : vector<32x384xi32>
    %c0_8 = arith.constant 0 : index
    %c0_9 = arith.constant 0 : index
    %16 = vector.load %arg11[%c0_8, %c0_9] : memref<32x1xf32, #tpu.memory_space<vmem>>, vector<32x1xf32>
    %cst_10 = arith.constant 0.000000e+00 : f32
    %17 = vector.broadcast %cst_10 : f32 to vector<32x384xf32>
    %18 = arith.select %15, %8, %17 : vector<32x384xi1>, vector<32x384xf32>
    %cst_11 = arith.constant dense<0.000000e+00> : vector<32xf32>
    %19 = vector.multi_reduction <add>, %18, %cst_11 [1] : vector<32x384xf32> to vector<32xf32>
    %20 = vector.shape_cast %19 : vector<32xf32> to vector<32x1xf32>
    %21 = arith.addf %16, %20 : vector<32x1xf32>
    %c0_12 = arith.constant 0 : index
    %c0_13 = arith.constant 0 : index
    %22 = vector.load %arg11[%c0_12, %c0_13] : memref<32x1xf32, #tpu.memory_space<vmem>>, vector<32x1xf32>
    tpu.vector_store %arg11[%c0_12, %c0_13], %21 {strides = array<i32>} : memref<32x1xf32, #tpu.memory_space<vmem>>, vector<32x1xf32>,
    %c0_14 = arith.constant 0 : index
    %c0_15 = arith.constant 0 : index
    %23 = vector.load %arg9[%c0_14, %c0_15] : memref<32x1xf32, #tpu.memory_space<vmem>>, vector<32x1xf32>
    %cst_16 = arith.constant dense<0xFF800000> : vector<32xf32>
    %24 = vector.multi_reduction <maximumf>, %8, %cst_16 [1] : vector<32x384xf32> to vector<32xf32>
    %25 = vector.shape_cast %24 : vector<32xf32> to vector<32x1xf32>
    %26 = arith.maximumf %23, %25 : vector<32x1xf32>
    %c0_17 = arith.constant 0 : index
    %c0_18 = arith.constant 0 : index
    %27 = vector.load %arg10[%c0_17, %c0_18] : memref<32x1xf32, #tpu.memory_space<vmem>>, vector<32x1xf32>
    %c0_19 = arith.constant 0 : index
    %c0_20 = arith.constant 0 : index
    %28 = vector.load %arg9[%c0_19, %c0_20] : memref<32x1xf32, #tpu.memory_space<vmem>>, vector<32x1xf32>
    %29 = arith.subf %28, %26 : vector<32x1xf32>
    %30 = math.exp %29 : vector<32x1xf32>
    %31 = arith.mulf %27, %30 : vector<32x1xf32>
    %32 = vector.broadcast %26 : vector<32x1xf32> to vector<32x384xf32>
    %33 = arith.subf %8, %32 : vector<32x384xf32>
    %34 = math.exp %33 : vector<32x384xf32>
    %cst_21 = arith.constant dense<0.000000e+00> : vector<32xf32>
    %35 = vector.multi_reduction <add>, %34, %cst_21 [1] : vector<32x384xf32> to vector<32xf32>
    %36 = vector.shape_cast %35 : vector<32xf32> to vector<32x1xf32>
    %37 = arith.addf %31, %36 : vector<32x1xf32>
    %c0_22 = arith.constant 0 : index
    %c0_23 = arith.constant 0 : index
    %38 = vector.load %arg10[%c0_22, %c0_23] : memref<32x1xf32, #tpu.memory_space<vmem>>, vector<32x1xf32>
    tpu.vector_store %arg10[%c0_22, %c0_23], %37 {strides = array<i32>} : memref<32x1xf32, #tpu.memory_space<vmem>>, vector<32x1xf32>,
    %c0_24 = arith.constant 0 : index
    %c0_25 = arith.constant 0 : index
    %39 = vector.load %arg9[%c0_24, %c0_25] : memref<32x1xf32, #tpu.memory_space<vmem>>, vector<32x1xf32>
    tpu.vector_store %arg9[%c0_24, %c0_25], %26 {strides = array<i32>} : memref<32x1xf32, #tpu.memory_space<vmem>>, vector<32x1xf32>,
    %c0_i32_26 = arith.constant 0 : i32
    %40 = arith.cmpi eq, %arg0, %c0_i32_26 : i32
    %41 = arith.extui %40 : i1 to i32
    %c0_i32_27 = arith.constant 0 : i32
    %42 = arith.cmpi ne, %41, %c0_i32_27 : i32
    scf.if %42 {
      %c0_28 = arith.constant 0 : index
      %c0_29 = arith.constant 0 : index
      %43 = vector.load %arg9[%c0_28, %c0_29] : memref<32x1xf32, #tpu.memory_space<vmem>>, vector<32x1xf32>
      %c0_30 = arith.constant 0 : index
      %c0_31 = arith.constant 0 : index
      %44 = vector.load %arg10[%c0_30, %c0_31] : memref<32x1xf32, #tpu.memory_space<vmem>>, vector<32x1xf32>
      %45 = math.log %44 : vector<32x1xf32>
      %46 = arith.addf %43, %45 : vector<32x1xf32>
      %c0_32 = arith.constant 0 : index
      %c0_33 = arith.constant 0 : index
      %47 = vector.load %arg11[%c0_32, %c0_33] : memref<32x1xf32, #tpu.memory_space<vmem>>, vector<32x1xf32>
      %48 = arith.subf %46, %47 : vector<32x1xf32>
      %49 = vector.shape_cast %48 : vector<32x1xf32> to vector<1x32x1xf32>
      %cst_34 = arith.constant dense<0.000000e+00> : vector<1xf32>
      %50 = vector.multi_reduction <add>, %49, %cst_34 [1, 2] : vector<1x32x1xf32> to vector<1xf32>
      %51 = vector.shape_cast %50 : vector<1xf32> to vector<1x1x1xf32>
      %52 = vector.extract %51[0, 0, 0] : f32 from vector<1x1x1xf32>
      %53 = vector.broadcast %52 : f32 to vector<1x1xf32>
      %cst_35 = arith.constant 3.200000e+01 : f32
      %54 = vector.broadcast %cst_35 : f32 to vector<1x1xf32>
      %55 = arith.divf %53, %54 : vector<1x1xf32>
      %c0_36 = arith.constant 0 : index
      %c0_37 = arith.constant 0 : index
      %56 = vector.load %arg11[%c0_36, %c0_37] : memref<32x1xf32, #tpu.memory_space<vmem>>, vector<32x1xf32>
      %c0_38 = arith.constant 0 : index
      %c0_39 = arith.constant 0 : index
      %57 = vector.load %arg9[%c0_38, %c0_39] : memref<32x1xf32, #tpu.memory_space<vmem>>, vector<32x1xf32>
      %58 = arith.cmpf oge, %56, %57 : vector<32x1xf32>
      %59 = arith.extui %58 : vector<32x1xi1> to vector<32x1xi32>
      %60 = arith.sitofp %59 : vector<32x1xi32> to vector<32x1xf32>
      %61 = vector.shape_cast %60 : vector<32x1xf32> to vector<1x32x1xf32>
      %cst_40 = arith.constant dense<0.000000e+00> : vector<1xf32>
      %62 = vector.multi_reduction <add>, %61, %cst_40 [1, 2] : vector<1x32x1xf32> to vector<1xf32>
      %63 = vector.shape_cast %62 : vector<1xf32> to vector<1x1x1xf32>
      %64 = vector.extract %63[0, 0, 0] : f32 from vector<1x1x1xf32>
      %65 = vector.broadcast %64 : f32 to vector<1x1xf32>
      %cst_41 = arith.constant 3.125000e+00 : f32
      %66 = vector.broadcast %cst_41 : f32 to vector<1x1xf32>
      %67 = arith.mulf %65, %66 : vector<1x1xf32>
      %c0_42 = arith.constant 0 : index
      %c0_43 = arith.constant 0 : index
      %68 = vector.load %arg8[%c0_42, %c0_43] : memref<1x1xf32, #tpu.memory_space<vmem>>, vector<1x1xf32>
      tpu.vector_store %arg8[%c0_42, %c0_43], %67 {strides = array<i32>} : memref<1x1xf32, #tpu.memory_space<vmem>>, vector<1x1xf32>,
      %c0_44 = arith.constant 0 : index
      %c0_45 = arith.constant 0 : index
      %69 = vector.load %arg12[%c0_44, %c0_45] : memref<1x1xf32, #tpu.memory_space<vmem>>, vector<1x1xf32>
      %70 = arith.addf %55, %69 : vector<1x1xf32>
      %c0_46 = arith.constant 0 : index
      %c0_47 = arith.constant 0 : index
      %71 = vector.load %arg7[%c0_46, %c0_47] : memref<1x1xf32, #tpu.memory_space<vmem>>, vector<1x1xf32>
      tpu.vector_store %arg7[%c0_46, %c0_47], %70 {strides = array<i32>} : memref<1x1xf32, #tpu.memory_space<vmem>>, vector<1x1xf32>,
    } else {
    }
    return
  }
  func.func @transform_0(%arg0: i32) -> (i32, i32) {
    %c0_i32 = arith.constant 0 : i32
    %c0_i32_0 = arith.constant 0 : i32
    %c0_i32_1 = arith.constant 0 : i32
    return %c0_i32, %c0_i32_0 : i32, i32
  }
  func.func @transform_1(%arg0: i32) -> (i32, i32) {
    %c0_i32 = arith.constant 0 : i32
    %c0_i32_0 = arith.constant 0 : i32
    return %arg0, %c0_i32 : i32, i32
  }
  func.func @transform_2(%arg0: i32) -> (i32, i32) {
    %c0_i32 = arith.constant 0 : i32
    %c0_i32_0 = arith.constant 0 : i32
    return %c0_i32, %arg0 : i32, i32
  }
  func.func @transform_3(%arg0: i32) -> (i32, i32) {
    %c0_i32 = arith.constant 0 : i32
    %c0_i32_0 = arith.constant 0 : i32
    %c0_i32_1 = arith.constant 0 : i32
    return %c0_i32, %c0_i32_0 : i32, i32
  }
  func.func @transform_4(%arg0: i32) -> i32 {
    %c0_i32 = arith.constant 0 : i32
    %c0_i32_0 = arith.constant 0 : i32
    return %c0_i32 : i32
  }
  func.func @transform_5(%arg0: i32) -> i32 {
    %c0_i32 = arith.constant 0 : i32
    %c0_i32_0 = arith.constant 0 : i32
    return %c0_i32 : i32
  }
  func.func @transform_6(%arg0: i32) -> (i32, i32) {
    %c0_i32 = arith.constant 0 : i32
    %c0_i32_0 = arith.constant 0 : i32
    %c0_i32_1 = arith.constant 0 : i32
    return %c0_i32, %c0_i32_0 : i32, i32
  }
  func.func @transform_7(%arg0: i32) -> (i32, i32) {
    %c0_i32 = arith.constant 0 : i32
    %c0_i32_0 = arith.constant 0 : i32
    %c0_i32_1 = arith.constant 0 : i32
    return %c0_i32, %c0_i32_0 : i32, i32
  }
}

</mosaic_0001>

<llo_original>
// kernel: tpu_custom_call.1
$region0: #{tpu_custom_call.1}
  #allocation0 [shape = 'u32[]', space=smem, size = 0x4, offset = 0x4, fixed_abs, tag = 'smem constant byte address 0x4 - core index']
  #allocation1 [shape = 'u32[144,128]{1,0:T(1,128)}', space=vmem, size = 0x12000, scoped, tag = 'internal scratch']
  #allocation2 [shape = 'f32[32,1]{1,0:T(8,128)}', space=vmem, size = 0x4000, scoped, tag = 'scratch operand']
  #allocation3 [shape = 'f32[32,1]{1,0:T(8,128)}', space=vmem, size = 0x4000, scoped, tag = 'scratch operand']
  #allocation4 [shape = 'f32[32,1]{1,0:T(8,128)}', space=vmem, size = 0x4000, scoped, tag = 'scratch operand']
  #allocation5 [shape = 'f32[1,1]{1,0:T(1,128)}', space=vmem, size = 0x200, scoped, tag = 'scratch operand']
  #allocation6 [shape = 'f32[1]{0:T(128)S(6)}', space=smem, size = 0x200, scoped, tag = 'scoped memory for tpu_custom_call.1']
  #allocation7 [shape = 'f32[1]{0:T(128)S(6)}', space=smem, size = 0x200, scoped, tag = 'scoped memory for tpu_custom_call.1']
  %s0 = inlined_call_operand.vmem [shape: f32[32,64], index: 0, kind: input, shape index: {}]
  %s1 = inlined_call_operand.vmem [shape: f32[384,64], index: 1, kind: input, shape index: {}]
  %s2 = inlined_call_operand.vmem [shape: f32[1,384], index: 2, kind: input, shape index: {}]
  %s3 = inlined_call_operand.vmem [shape: s32[32,1], index: 3, kind: input, shape index: {}]
  %s4 = inlined_call_operand.<no memory space> [shape: f32[1], index: 4, kind: input, shape index: {}]
  %s5 = inlined_call_operand.<no memory space> [shape: f32[1], index: 5, kind: input, shape index: {}]
  %s6 = inlined_call_operand.hbm [shape: f32[1,1], index: 6, kind: output, shape index: {0}]
  %s7 = inlined_call_operand.hbm [shape: f32[1,1], index: 7, kind: output, shape index: {1}]
  %8 = xla_tuple %s6, %s7
  %s9 = sld [smem:[#allocation0]]
  $region50: #{tpu_custom_call.1} parent=0
    _
  %s11 = ssub.s32 1, %s9
  %s12 = scalar_select 0, %s11, %s9
  %13 = sst [smem:[#allocation6]] %s4
  %14 = sst [smem:[#allocation7]] %s5
  $region1: #{tpu_custom_call.1} parent=0
    #allocation8 [shape = 'u8[512]{0}', space=vmem, size = 0x400, scoped, tag = 'output window, operand 0, single buffered']
    #allocation9 [shape = 's32[1]{0}', space=sflag, size = 0x4, scoped, tag = 'scoped memory for tpu_custom_call.1']
    #allocation10 [shape = 'u8[512]{0}', space=vmem, size = 0x400, scoped, tag = 'output window, operand 1, single buffered']
    #allocation11 [shape = 's32[1]{0}', space=sflag, size = 0x4, scoped, tag = 'scoped memory for tpu_custom_call.1']
    %15 = vsyncpa [#allocation9], 0
    %16 = vsyncpa [#allocation11], 0
    // Predicated region
    $region2: #{tpu_custom_call.1} parent=1 // pred_check
      _
    $region3: #{tpu_custom_call.1} parent=1 // pred_check_branch
      %18 = sbr.rel (0) target = $region5
    $region4: #{tpu_custom_call.1} parent=1 // pred_region
      _
    $region5: #{tpu_custom_call.1} parent=1 // pred_fallthru
      _
    // Predicated region
    $region6: #{tpu_custom_call.1} parent=1 // pred_check
      _
    $region7: #{tpu_custom_call.1} parent=1 // pred_check_branch
      %20 = sbr.rel (0) target = $region9
    $region8: #{tpu_custom_call.1} parent=1 // pred_region
      _
    $region9: #{tpu_custom_call.1} parent=1 // pred_fallthru
      _
    // Predicated region
    $region10: #{tpu_custom_call.1} parent=1 // pred_check
      _
    $region11: #{tpu_custom_call.1} parent=1 // pred_check_branch
      %22 = sbr.rel (0) target = $region13
    $region12: #{tpu_custom_call.1} parent=1 // pred_region
      _
    $region13: #{tpu_custom_call.1} parent=1 // pred_fallthru
      _
    // Predicated region
    $region14: #{tpu_custom_call.1} parent=1 // pred_check
      _
    $region15: #{tpu_custom_call.1} parent=1 // pred_check_branch
      %24 = sbr.rel (0) target = $region17
    $region16: #{tpu_custom_call.1} parent=1 // pred_region
      _
    $region17: #{tpu_custom_call.1} parent=1 // pred_fallthru
      _
    // Predicated region
    $region18: #{tpu_custom_call.1} parent=1 // pred_check
      _
    $region19: #{tpu_custom_call.1} parent=1 // pred_check_branch
      %26 = sbr.rel (0) target = $region21
    $region20: #{tpu_custom_call.1} parent=1 // pred_region
      _
    $region21: #{tpu_custom_call.1} parent=1 // pred_fallthru
      _
    // Predicated region
    $region22: #{tpu_custom_call.1} parent=1 // pred_check
      _
    $region23: #{tpu_custom_call.1} parent=1 // pred_check_branch
      %28 = sbr.rel (0) target = $region25
    $region24: #{tpu_custom_call.1} parent=1 // pred_region
      _
    $region25: #{tpu_custom_call.1} parent=1 // pred_fallthru
      _
    %p29 = scmp.eq.s32.totalorder 0, 0
    // Predicated region
    $region26: #{tpu_custom_call.1} parent=1 // pred_check
      %p30 = pneg %p29
    $region27: #{tpu_custom_call.1} parent=1 // pred_check_branch
      %32 = sbr.rel (%p30) target = $region29
    $region28: #{tpu_custom_call.1} parent=1 // pred_region
      %vm33 = vcmask 7168
      %34 = vst.msk [vmem:[#allocation2] sm:$0xff] %vm33, -inf
      %35 = vst.msk [vmem:[#allocation2 + $0x8] sm:$0xff] %vm33, -inf
      %36 = vst.msk [vmem:[#allocation2 + $0x10] sm:$0xff] %vm33, -inf
      %37 = vst.msk [vmem:[#allocation2 + $0x18] sm:$0xff] %vm33, -inf
      %38 = vst.msk [vmem:[#allocation3] sm:$0xff] %vm33, 0.0
      %39 = vst.msk [vmem:[#allocation3 + $0x8] sm:$0xff] %vm33, 0.0
      %40 = vst.msk [vmem:[#allocation3 + $0x10] sm:$0xff] %vm33, 0.0
      %41 = vst.msk [vmem:[#allocation3 + $0x18] sm:$0xff] %vm33, 0.0
      %42 = vst.msk [vmem:[#allocation4] sm:$0xff] %vm33, 0.0
      %43 = vst.msk [vmem:[#allocation4 + $0x8] sm:$0xff] %vm33, 0.0
      %44 = vst.msk [vmem:[#allocation4 + $0x10] sm:$0xff] %vm33, 0.0
      %45 = vst.msk [vmem:[#allocation4 + $0x18] sm:$0xff] %vm33, 0.0
      %v46 = vld [vmem:[%s0] sm:$0xff]
      %v47 = vld [vmem:[%s0 + $0x8] sm:$0xff]
      %v48 = vld [vmem:[%s0 + $0x10] sm:$0xff]
      %v49 = vld [vmem:[%s0 + $0x18] sm:$0xff]
      %v50 = vmul.f32 %v46, %v46
      %v51 = vmul.f32 %v47, %v47
      %vm52 = vcmask 523264
      %v53 = vsel %vm52, %v50, 0.0
      %54 = vadd.xlane.f32.xlu0 %v53
      %v55 = vpop.xlane.xlu0 %54
      %v56 = vsel %vm52, %v51, 0.0
      %57 = vadd.xlane.f32.xlu0 %v56
      %v58 = vpop.xlane.xlu0 %57
      %v59 = vrsqrt.pop %v55
      %v60 = vmul.f32 %v55, %v59
      %vm61 = vcmp.eq.f32.partialorder %v55, inf
      %v62 = vsel %vm61, %v55, %v60
      %vm63 = vcmp.eq.f32.partialorder %v55, 0.0
      %v64 = vand.u32 %v55, 2147483648
      %v65 = vsel %vm63, %v64, %v62
      %v66 = vrsqrt.pop %v58
      %v67 = vmul.f32 %v58, %v66
      %vm68 = vcmp.eq.f32.partialorder %v58, inf
      %v69 = vsel %vm68, %v58, %v67
      %vm70 = vcmp.eq.f32.partialorder %v58, 0.0
      %v71 = vand.u32 %v58, 2147483648
      %v72 = vsel %vm70, %v71, %v69
      %v73 = vmax.f32 %v65, 1e-08
      %v74 = vmax.f32 %v72, 1e-08
      %v75 = vrcp.pop %v73
      %v76 = vmul.f32 1.0, %v75
      %v77 = vrcp.pop %v74
      %v78 = vmul.f32 1.0, %v77
      %v79 = vmul.f32 %v48, %v48
      %v80 = vmul.f32 %v49, %v49
      %v81 = vsel %vm52, %v79, 0.0
      %82 = vadd.xlane.f32.xlu0 %v81
      %v83 = vpop.xlane.xlu0 %82
      %v84 = vsel %vm52, %v80, 0.0
      %85 = vadd.xlane.f32.xlu0 %v84
      %v86 = vpop.xlane.xlu0 %85
      %v87 = vrsqrt.pop %v83
      %v88 = vmul.f32 %v83, %v87
      %vm89 = vcmp.eq.f32.partialorder %v83, inf
      %v90 = vsel %vm89, %v83, %v88
      %vm91 = vcmp.eq.f32.partialorder %v83, 0.0
      %v92 = vand.u32 %v83, 2147483648
      %v93 = vsel %vm91, %v92, %v90
      %v94 = vrsqrt.pop %v86
      %v95 = vmul.f32 %v86, %v94
      %vm96 = vcmp.eq.f32.partialorder %v86, inf
      %v97 = vsel %vm96, %v86, %v95
      %vm98 = vcmp.eq.f32.partialorder %v86, 0.0
      %v99 = vand.u32 %v86, 2147483648
      %v100 = vsel %vm98, %v99, %v97
      %v101 = vmax.f32 %v93, 1e-08
      %v102 = vmax.f32 %v100, 1e-08
      %v103 = vrcp.pop %v101
      %v104 = vmul.f32 1.0, %v103
      %v105 = vrcp.pop %v102
      %v106 = vmul.f32 1.0, %v105
      %v107 = vmul.f32 %v46, %v76
      %v108 = vmul.f32 %v47, %v78
      %v109 = vmul.f32 %v48, %v104
      %v110 = vmul.f32 %v49, %v106
      %v112 = vsel %vm52, %v107, 0
      %v115 = vsel %vm52, %v108, 0
      %v118 = vsel %vm52, %v109, 0
      %v121 = vsel %vm52, %v110, 0
      %123 = vmatprep.subr.mxu0 0.0
      %124 = vmatpush1.xpose.msra.mxu0 0.0
      %125 = vmatprep.subr.mxu0 0.0
      %126 = vmatpush1.xpose.msra.mxu0 0.0
      %127 = vmatprep.subr.mxu0 0.0
      %128 = vmatpush1.xpose.msra.mxu0 0.0
      %129 = vmatprep.subr.mxu0 0.0
      %130 = vmatpush1.xpose.msra.mxu0 0.0
      %131 = vmatprep.subr.mxu0 0.0
      %132 = vmatpush1.xpose.msra.mxu0 0.0
      %133 = vmatprep.subr.mxu0 0.0
      %134 = vmatpush1.xpose.msra.mxu0 0.0
      %135 = vmatprep.subr.mxu0 0.0
      %136 = vmatpush1.xpose.msra.mxu0 0.0
      %137 = vmatprep.subr.mxu0 0.0
      %138 = vmatpush1.xpose.msra.mxu0 0.0
      %139 = vmatprep.subr.mxu0 0.0
      %140 = vmatpush1.xpose.msra.mxu0 0.0
      %141 = vmatprep.subr.mxu0 0.0
      %142 = vmatpush1.xpose.msra.mxu0 0.0
      %143 = vmatprep.subr.mxu0 0.0
      %144 = vmatpush1.xpose.msra.mxu0 0.0
      %145 = vmatprep.subr.mxu0 0.0
      %146 = vmatpush1.xpose.msra.mxu0 0.0
      %147 = vmatprep.subr.mxu0 0.0
      %148 = vmatpush1.xpose.msra.mxu0 0.0
      %149 = vmatprep.subr.mxu0 0.0
      %150 = vmatpush1.xpose.msra.mxu0 0.0
      %151 = vmatprep.subr.mxu0 0.0
      %152 = vmatpush1.xpose.msra.mxu0 %v121
      %153 = vmatprep.subr.mxu0 0.0
      %154 = vmatpush1.xpose.msra.mxu0 %v118
      %155 = vmatprep.subr.mxu0 0.0
      %156 = vmatpush2.xpose.msra.mxu0 0.0
      %157 = vmatprep.subr.mxu0 0.0
      %158 = vmatpush2.xpose.msra.mxu0 0.0
      %159 = vmatprep.subr.mxu0 0.0
      %160 = vmatpush2.xpose.msra.mxu0 0.0
      %161 = vmatprep.subr.mxu0 0.0
      %162 = vmatpush2.xpose.msra.mxu0 0.0
      %163 = vmatprep.subr.mxu0 0.0
      %164 = vmatpush2.xpose.msra.mxu0 0.0
      %165 = vmatprep.subr.mxu0 0.0
      %166 = vmatpush2.xpose.msra.mxu0 0.0
      %167 = vmatprep.subr.mxu0 0.0
      %168 = vmatpush2.xpose.msra.mxu0 0.0
      %169 = vmatprep.subr.mxu0 0.0
      %170 = vmatpush2.xpose.msra.mxu0 0.0
      %171 = vmatprep.subr.mxu0 0.0
      %172 = vmatpush2.xpose.msra.mxu0 0.0
      %173 = vmatprep.subr.mxu0 0.0
      %174 = vmatpush2.xpose.msra.mxu0 0.0
      %175 = vmatprep.subr.mxu0 0.0
      %176 = vmatpush2.xpose.msra.mxu0 0.0
      %177 = vmatprep.subr.mxu0 0.0
      %178 = vmatpush2.xpose.msra.mxu0 0.0
      %179 = vmatprep.subr.mxu0 0.0
      %180 = vmatpush2.xpose.msra.mxu0 0.0
      %181 = vmatprep.subr.mxu0 0.0
      %182 = vmatpush2.xpose.msra.mxu0 0.0
      %183 = vmatprep.subr.mxu0 0.0
      %184 = vmatpush2.xpose.msra.mxu0 0.0
      %185 = vmatprep.subr.mxu0 0.0
      %186 = vmatpush2.xpose.msra.mxu0 0.0
      %187 = vmatprep.mubr.f32.mxu0 0.0
      %188 = vmatmul.mubr.f32.gmra.mxu0 %v112
      %v189 = vpop.f32.mrf.mxu0
      %v190 = vadd.f32 0.0, %v189
      %v191 = vpop.f32.mrf.mxu0
      %192 = vmatprep.mubr.f32.mxu0 0.0
      %193 = vmatmul.mubr.f32.gmra.mxu0 %v115
      %v194 = vpop.f32.mrf.mxu0
      %v195 = vadd.f32 0.0, %v194
      %v196 = vpop.f32.mrf.mxu0
      %197 = vdwg.mxu0
      %s198 = sld [smem:[#allocation6]]
      %v199 = vstv %s198
      %v200 = vmul.f32 %v190, %v199
      %v201 = vmul.f32 %v195, %v199
      %s202 = sld [smem:[#allocation7]]
      %v203 = vstv %s202
      %v204 = vadd.f32 %v200, %v203
      %v205 = vadd.f32 %v201, %v203
      %vm206 = vcmask 130048
      %v207 = vsel %vm206, %v204, -inf
      %208 = vmax.xlane.f32.xlu0 %v207
      %v209 = vpop.xlane.xlu0 %208
      %v210 = vsel %vm206, %v205, -inf
      %211 = vmax.xlane.f32.xlu0 %v210
      %v212 = vpop.xlane.xlu0 %211
      %v213 = vsub.f32 %v204, %v209
      %v214 = vsub.f32 %v205, %v212
      %v215 = vmul.f32 %v213, 1.442695
      %v216 = vpow.pop %v215
      %v217 = vmul.f32 %v214, 1.442695
      %v218 = vpow.pop %v217
      %v219 = vsel %vm206, %v216, 0.0
      %220 = vadd.xlane.f32.xlu0 %v219
      %v221 = vpop.xlane.xlu0 %220
      %v222 = vsel %vm206, %v218, 0.0
      %223 = vadd.xlane.f32.xlu0 %v222
      %v224 = vpop.xlane.xlu0 %223
      %v225 = vlog2.pop %v221
      %v226 = vmul.f32 %v225, 0.6931472
      %v227 = vlog2.pop %v224
      %v228 = vmul.f32 %v227, 0.6931472
      %v229 = vadd.f32 %v209, %v226
      %v230 = vadd.f32 %v212, %v228
      %v231 = vlaneseq
      %v232 = vshrl.u32 %v231, 7
      %v233 = vadd.s32 %v232, 8
      %v234 = vlaneseq
      %v235 = vand.u32 %v234, 127
      %vm236 = vcmp.eq.s32.totalorder %v232, %v235
      %vm237 = vcmp.eq.s32.totalorder %v233, %v235
      %v238 = vsel %vm236, %v204, 0.0
      %v239 = vsel %vm237, %v205, 0.0
      %v240 = vsel %vm206, %v238, 0.0
      %241 = vadd.xlane.f32.xlu0 %v240
      %v242 = vpop.xlane.xlu0 %241
      %v243 = vsel %vm206, %v239, 0.0
      %244 = vadd.xlane.f32.xlu0 %v243
      %v245 = vpop.xlane.xlu0 %244
      %v246 = vsub.f32 %v229, %v242
      %v247 = vsub.f32 %v230, %v245
      %v248 = vsel %vm33, %v246, 0.0
      %v249 = vsel %vm33, %v247, 0.0
      %v250 = vadd.f32 %v248, %v249
      %251 = vadd.xlane.f32.xlu0 %v250
      %v252 = vpop.xlane.xlu0 %251
      %v253 = vrot.slane %v252, 4
      %v254 = vadd.f32 %v252, %v253
      %v255 = vrot.slane %v254, 2
      %v256 = vadd.f32 %v254, %v255
      %v257 = vrot.slane %v256, 1
      %v258 = vadd.f32 %v256, %v257
      %s259 = vtos %v258
      %v260 = vstv %s259
      %v261 = vrcp.pop 16.0
      %v262 = vmul.f32 %v260, %v261
      %vm263 = vcmask 0
      %264 = vst.msk [vmem:[#allocation5] sm:$0x1] %vm263, %v262
    $region29: #{tpu_custom_call.1} parent=1 // pred_fallthru
      _
    %v265 = vld [vmem:[%s0] sm:$0xff]
    %v266 = vld [vmem:[%s0 + $0x8] sm:$0xff]
    %v267 = vld [vmem:[%s0 + $0x10] sm:$0xff]
    %v268 = vld [vmem:[%s0 + $0x18] sm:$0xff]
    %v269 = vld [vmem:[%s1] sm:$0xff]
    %v270 = vld [vmem:[%s1 + $0x8] sm:$0xff]
    %v271 = vld [vmem:[%s1 + $0x10] sm:$0xff]
    %v272 = vld [vmem:[%s1 + $0x18] sm:$0xff]
    %v273 = vld [vmem:[%s1 + $0x20] sm:$0xff]
    %v274 = vld [vmem:[%s1 + $0x28] sm:$0xff]
    %v275 = vld [vmem:[%s1 + $0x30] sm:$0xff]
    %v276 = vld [vmem:[%s1 + $0x38] sm:$0xff]
    %v277 = vld [vmem:[%s1 + $0x40] sm:$0xff]
    %v278 = vld [vmem:[%s1 + $0x48] sm:$0xff]
    %v279 = vld [vmem:[%s1 + $0x50] sm:$0xff]
    %v280 = vld [vmem:[%s1 + $0x58] sm:$0xff]
    %v281 = vld [vmem:[%s1 + $0x60] sm:$0xff]
    %v282 = vld [vmem:[%s1 + $0x68] sm:$0xff]
    %v283 = vld [vmem:[%s1 + $0x70] sm:$0xff]
    %v284 = vld [vmem:[%s1 + $0x78] sm:$0xff]
    %v285 = vld [vmem:[%s1 + $0x80] sm:$0xff]
    %v286 = vld [vmem:[%s1 + $0x88] sm:$0xff]
    %v287 = vld [vmem:[%s1 + $0x90] sm:$0xff]
    %v288 = vld [vmem:[%s1 + $0x98] sm:$0xff]
    %v289 = vld [vmem:[%s1 + $0xa0] sm:$0xff]
    %v290 = vld [vmem:[%s1 + $0xa8] sm:$0xff]
    %v291 = vld [vmem:[%s1 + $0xb0] sm:$0xff]
    %v292 = vld [vmem:[%s1 + $0xb8] sm:$0xff]
    %v293 = vld [vmem:[%s1 + $0xc0] sm:$0xff]
    %v294 = vld [vmem:[%s1 + $0xc8] sm:$0xff]
    %v295 = vld [vmem:[%s1 + $0xd0] sm:$0xff]
    %v296 = vld [vmem:[%s1 + $0xd8] sm:$0xff]
    %v297 = vld [vmem:[%s1 + $0xe0] sm:$0xff]
    %v298 = vld [vmem:[%s1 + $0xe8] sm:$0xff]
    %v299 = vld [vmem:[%s1 + $0xf0] sm:$0xff]
    %v300 = vld [vmem:[%s1 + $0xf8] sm:$0xff]
    %v301 = vld [vmem:[%s1 + $0x100] sm:$0xff]
    %v302 = vld [vmem:[%s1 + $0x108] sm:$0xff]
    %v303 = vld [vmem:[%s1 + $0x110] sm:$0xff]
    %v304 = vld [vmem:[%s1 + $0x118] sm:$0xff]
    %v305 = vld [vmem:[%s1 + $0x120] sm:$0xff]
    %v306 = vld [vmem:[%s1 + $0x128] sm:$0xff]
    %v307 = vld [vmem:[%s1 + $0x130] sm:$0xff]
    %v308 = vld [vmem:[%s1 + $0x138] sm:$0xff]
    %v309 = vld [vmem:[%s1 + $0x140] sm:$0xff]
    %v310 = vld [vmem:[%s1 + $0x148] sm:$0xff]
    %v311 = vld [vmem:[%s1 + $0x150] sm:$0xff]
    %v312 = vld [vmem:[%s1 + $0x158] sm:$0xff]
    %v313 = vld [vmem:[%s1 + $0x160] sm:$0xff]
    %v314 = vld [vmem:[%s1 + $0x168] sm:$0xff]
    %v315 = vld [vmem:[%s1 + $0x170] sm:$0xff]
    %v316 = vld [vmem:[%s1 + $0x178] sm:$0xff]
    %v317 = vld [vmem:[%s2] sm:$0x7]
    %v319 = vlaneseq
    %v320 = vshrl.u32 %v319, 7
    %v321 = vsub.s32 0, %v320
    %v322 = vrot.slane %v317, %v321
    %v323 = vlaneseq
    %v324 = vshrl.u32 %v323, 7
    %v325 = vsub.s32 1, %v324
    %v326 = vrot.slane %v317, %v325
    %v327 = vlaneseq
    %v328 = vshrl.u32 %v327, 7
    %v329 = vsub.s32 2, %v328
    %v330 = vrot.slane %v317, %v329
    %vm334 = vcmask 523264
    %v336 = vsel %vm334, %v265, 0
    %v339 = vsel %vm334, %v266, 0
    %v342 = vsel %vm334, %v267, 0
    %v345 = vsel %vm334, %v268, 0
    %v348 = vsel %vm334, %v269, 0
    %v351 = vsel %vm334, %v270, 0
    %v354 = vsel %vm334, %v271, 0
    %v357 = vsel %vm334, %v272, 0
    %v360 = vsel %vm334, %v273, 0
    %v363 = vsel %vm334, %v274, 0
    %v366 = vsel %vm334, %v275, 0
    %v369 = vsel %vm334, %v276, 0
    %v372 = vsel %vm334, %v277, 0
    %v375 = vsel %vm334, %v278, 0
    %v378 = vsel %vm334, %v279, 0
    %v381 = vsel %vm334, %v280, 0
    %v384 = vsel %vm334, %v281, 0
    %v387 = vsel %vm334, %v282, 0
    %v390 = vsel %vm334, %v283, 0
    %v393 = vsel %vm334, %v284, 0
    %v396 = vsel %vm334, %v285, 0
    %v399 = vsel %vm334, %v286, 0
    %v402 = vsel %vm334, %v287, 0
    %v405 = vsel %vm334, %v288, 0
    %v408 = vsel %vm334, %v289, 0
    %v411 = vsel %vm334, %v290, 0
    %v414 = vsel %vm334, %v291, 0
    %v417 = vsel %vm334, %v292, 0
    %v420 = vsel %vm334, %v293, 0
    %v423 = vsel %vm334, %v294, 0
    %v426 = vsel %vm334, %v295, 0
    %v429 = vsel %vm334, %v296, 0
    %v432 = vsel %vm334, %v297, 0
    %v435 = vsel %vm334, %v298, 0
    %v438 = vsel %vm334, %v299, 0
    %v441 = vsel %vm334, %v300, 0
    %v444 = vsel %vm334, %v301, 0
    %v447 = vsel %vm334, %v302, 0
    %v450 = vsel %vm334, %v303, 0
    %v453 = vsel %vm334, %v304, 0
    %v456 = vsel %vm334, %v305, 0
    %v459 = vsel %vm334, %v306, 0
    %v462 = vsel %vm334, %v307, 0
    %v465 = vsel %vm334, %v308, 0
    %v468 = vsel %vm334, %v309, 0
    %v471 = vsel %vm334, %v310, 0
    %v474 = vsel %vm334, %v311, 0
    %v477 = vsel %vm334, %v312, 0
    %v480 = vsel %vm334, %v313, 0
    %v483 = vsel %vm334, %v314, 0
    %v486 = vsel %vm334, %v315, 0
    %v489 = vsel %vm334, %v316, 0
    %491 = vmatprep.subr.mxu0 0.0
    %492 = vmatpush1.xpose.msra.mxu0 %v393
    %493 = vmatprep.subr.mxu0 0.0
    %494 = vmatpush1.xpose.msra.mxu0 %v390
    %495 = vmatprep.subr.mxu0 0.0
    %496 = vmatpush1.xpose.msra.mxu0 %v387
    %497 = vmatprep.subr.mxu0 0.0
    %498 = vmatpush1.xpose.msra.mxu0 %v384
    %499 = vmatprep.subr.mxu0 0.0
    %500 = vmatpush1.xpose.msra.mxu0 %v381
    %501 = vmatprep.subr.mxu0 0.0
    %502 = vmatpush1.xpose.msra.mxu0 %v378
    %503 = vmatprep.subr.mxu0 0.0
    %504 = vmatpush1.xpose.msra.mxu0 %v375
    %505 = vmatprep.subr.mxu0 0.0
    %506 = vmatpush1.xpose.msra.mxu0 %v372
    %507 = vmatprep.subr.mxu0 0.0
    %508 = vmatpush1.xpose.msra.mxu0 %v369
    %509 = vmatprep.subr.mxu0 0.0
    %510 = vmatpush1.xpose.msra.mxu0 %v366
    %511 = vmatprep.subr.mxu0 0.0
    %512 = vmatpush1.xpose.msra.mxu0 %v363
    %513 = vmatprep.subr.mxu0 0.0
    %514 = vmatpush1.xpose.msra.mxu0 %v360
    %515 = vmatprep.subr.mxu0 0.0
    %516 = vmatpush1.xpose.msra.mxu0 %v357
    %517 = vmatprep.subr.mxu0 0.0
    %518 = vmatpush1.xpose.msra.mxu0 %v354
    %519 = vmatprep.subr.mxu0 0.0
    %520 = vmatpush1.xpose.msra.mxu0 %v351
    %521 = vmatprep.subr.mxu0 0.0
    %522 = vmatpush1.xpose.msra.mxu0 %v348
    %523 = vmatprep.subr.mxu0 0.0
    %524 = vmatpush2.xpose.msra.mxu0 %v441
    %525 = vmatprep.subr.mxu0 0.0
    %526 = vmatpush2.xpose.msra.mxu0 %v438
    %527 = vmatprep.subr.mxu0 0.0
    %528 = vmatpush2.xpose.msra.mxu0 %v435
    %529 = vmatprep.subr.mxu0 0.0
    %530 = vmatpush2.xpose.msra.mxu0 %v432
    %531 = vmatprep.subr.mxu0 0.0
    %532 = vmatpush2.xpose.msra.mxu0 %v429
    %533 = vmatprep.subr.mxu0 0.0
    %534 = vmatpush2.xpose.msra.mxu0 %v426
    %535 = vmatprep.subr.mxu0 0.0
    %536 = vmatpush2.xpose.msra.mxu0 %v423
    %537 = vmatprep.subr.mxu0 0.0
    %538 = vmatpush2.xpose.msra.mxu0 %v420
    %539 = vmatprep.subr.mxu0 0.0
    %540 = vmatpush2.xpose.msra.mxu0 %v417
    %541 = vmatprep.subr.mxu0 0.0
    %542 = vmatpush2.xpose.msra.mxu0 %v414
    %543 = vmatprep.subr.mxu0 0.0
    %544 = vmatpush2.xpose.msra.mxu0 %v411
    %545 = vmatprep.subr.mxu0 0.0
    %546 = vmatpush2.xpose.msra.mxu0 %v408
    %547 = vmatprep.subr.mxu0 0.0
    %548 = vmatpush2.xpose.msra.mxu0 %v405
    %549 = vmatprep.subr.mxu0 0.0
    %550 = vmatpush2.xpose.msra.mxu0 %v402
    %551 = vmatprep.subr.mxu0 0.0
    %552 = vmatpush2.xpose.msra.mxu0 %v399
    %553 = vmatprep.subr.mxu0 0.0
    %554 = vmatpush2.xpose.msra.mxu0 %v396
    %555 = vmatprep.mubr.f32.mxu0 0.0
    %556 = vmatmul.mubr.f32.gmra.mxu0 %v336
    %v557 = vpop.f32.mrf.mxu0
    %v558 = vadd.f32 %v322, %v557
    %v559 = vpop.f32.mrf.mxu0
    %v560 = vadd.f32 %v326, %v559
    %561 = vmatprep.mubr.f32.mxu0 0.0
    %562 = vmatmul.mubr.f32.gmra.mxu0 %v339
    %v563 = vpop.f32.mrf.mxu0
    %v564 = vadd.f32 %v322, %v563
    %v565 = vpop.f32.mrf.mxu0
    %v566 = vadd.f32 %v326, %v565
    %567 = vmatprep.mubr.f32.mxu0 0.0
    %568 = vmatmul.mubr.f32.gmra.mxu0 %v342
    %v569 = vpop.f32.mrf.mxu0
    %v570 = vadd.f32 %v322, %v569
    %v571 = vpop.f32.mrf.mxu0
    %v572 = vadd.f32 %v326, %v571
    %573 = vmatprep.mubr.f32.mxu0 0.0
    %574 = vmatmul.mubr.f32.gmra.mxu0 %v345
    %v575 = vpop.f32.mrf.mxu0
    %v576 = vadd.f32 %v322, %v575
    %v577 = vpop.f32.mrf.mxu0
    %v578 = vadd.f32 %v326, %v577
    %579 = vdwg.mxu0
    %580 = vmatprep.subr.mxu0 0.0
    %581 = vmatpush1.xpose.msra.mxu0 %v489
    %582 = vmatprep.subr.mxu0 0.0
    %583 = vmatpush1.xpose.msra.mxu0 %v486
    %584 = vmatprep.subr.mxu0 0.0
    %585 = vmatpush1.xpose.msra.mxu0 %v483
    %586 = vmatprep.subr.mxu0 0.0
    %587 = vmatpush1.xpose.msra.mxu0 %v480
    %588 = vmatprep.subr.mxu0 0.0
    %589 = vmatpush1.xpose.msra.mxu0 %v477
    %590 = vmatprep.subr.mxu0 0.0
    %591 = vmatpush1.xpose.msra.mxu0 %v474
    %592 = vmatprep.subr.mxu0 0.0
    %593 = vmatpush1.xpose.msra.mxu0 %v471
    %594 = vmatprep.subr.mxu0 0.0
    %595 = vmatpush1.xpose.msra.mxu0 %v468
    %596 = vmatprep.subr.mxu0 0.0
    %597 = vmatpush1.xpose.msra.mxu0 %v465
    %598 = vmatprep.subr.mxu0 0.0
    %599 = vmatpush1.xpose.msra.mxu0 %v462
    %600 = vmatprep.subr.mxu0 0.0
    %601 = vmatpush1.xpose.msra.mxu0 %v459
    %602 = vmatprep.subr.mxu0 0.0
    %603 = vmatpush1.xpose.msra.mxu0 %v456
    %604 = vmatprep.subr.mxu0 0.0
    %605 = vmatpush1.xpose.msra.mxu0 %v453
    %606 = vmatprep.subr.mxu0 0.0
    %607 = vmatpush1.xpose.msra.mxu0 %v450
    %608 = vmatprep.subr.mxu0 0.0
    %609 = vmatpush1.xpose.msra.mxu0 %v447
    %610 = vmatprep.subr.mxu0 0.0
    %611 = vmatpush1.xpose.msra.mxu0 %v444
    %612 = vmatprep.subr.mxu0 0.0
    %613 = vmatpush2.xpose.msra.mxu0 0.0
    %614 = vmatprep.subr.mxu0 0.0
    %615 = vmatpush2.xpose.msra.mxu0 0.0
    %616 = vmatprep.subr.mxu0 0.0
    %617 = vmatpush2.xpose.msra.mxu0 0.0
    %618 = vmatprep.subr.mxu0 0.0
    %619 = vmatpush2.xpose.msra.mxu0 0.0
    %620 = vmatprep.subr.mxu0 0.0
    %621 = vmatpush2.xpose.msra.mxu0 0.0
    %622 = vmatprep.subr.mxu0 0.0
    %623 = vmatpush2.xpose.msra.mxu0 0.0
    %624 = vmatprep.subr.mxu0 0.0
    %625 = vmatpush2.xpose.msra.mxu0 0.0
    %626 = vmatprep.subr.mxu0 0.0
    %627 = vmatpush2.xpose.msra.mxu0 0.0
    %628 = vmatprep.subr.mxu0 0.0
    %629 = vmatpush2.xpose.msra.mxu0 0.0
    %630 = vmatprep.subr.mxu0 0.0
    %631 = vmatpush2.xpose.msra.mxu0 0.0
    %632 = vmatprep.subr.mxu0 0.0
    %633 = vmatpush2.xpose.msra.mxu0 0.0
    %634 = vmatprep.subr.mxu0 0.0
    %635 = vmatpush2.xpose.msra.mxu0 0.0
    %636 = vmatprep.subr.mxu0 0.0
    %637 = vmatpush2.xpose.msra.mxu0 0.0
    %638 = vmatprep.subr.mxu0 0.0
    %639 = vmatpush2.xpose.msra.mxu0 0.0
    %640 = vmatprep.subr.mxu0 0.0
    %641 = vmatpush2.xpose.msra.mxu0 0.0
    %642 = vmatprep.subr.mxu0 0.0
    %643 = vmatpush2.xpose.msra.mxu0 0.0
    %644 = vmatprep.mubr.f32.mxu0 0.0
    %645 = vmatmul.mubr.f32.gmra.mxu0 %v336
    %v646 = vpop.f32.mrf.mxu0
    %v647 = vadd.f32 %v330, %v646
    %v648 = vpop.f32.mrf.mxu0
    %649 = vmatprep.mubr.f32.mxu0 0.0
    %650 = vmatmul.mubr.f32.gmra.mxu0 %v339
    %v651 = vpop.f32.mrf.mxu0
    %v652 = vadd.f32 %v330, %v651
    %v653 = vpop.f32.mrf.mxu0
    %654 = vmatprep.mubr.f32.mxu0 0.0
    %655 = vmatmul.mubr.f32.gmra.mxu0 %v342
    %v656 = vpop.f32.mrf.mxu0
    %v657 = vadd.f32 %v330, %v656
    %v658 = vpop.f32.mrf.mxu0
    %659 = vmatprep.mubr.f32.mxu0 0.0
    %660 = vmatmul.mubr.f32.gmra.mxu0 %v345
    %v661 = vpop.f32.mrf.mxu0
    %v662 = vadd.f32 %v330, %v661
    %v663 = vpop.f32.mrf.mxu0
    %664 = vdwg.mxu0
    %v665 = vlaneseq
    %v666 = vand.u32 %v665, 127
    %v667 = vadd.s32 %v666, 128
    %v668 = vadd.s32 %v666, 256
    %s669 = smul.u32 0, 384
    %v670 = vstv %s669
    %v671 = vadd.s32 %v666, %v670
    %v672 = vadd.s32 %v667, %v670
    %v673 = vadd.s32 %v668, %v670
    %v674 = vld [vmem:[%s3] sm:$0xff]
    %v675 = vld [vmem:[%s3 + $0x8] sm:$0xff]
    %v676 = vld [vmem:[%s3 + $0x10] sm:$0xff]
    %v677 = vld [vmem:[%s3 + $0x18] sm:$0xff]
    %678 = vset.pattern.permute.xlu0 0
    %679 = vperm.xlu0 %678, %v674
    %v680 = vpop.permute.xlu0 %679
    %681 = vset.pattern.permute.xlu0 0
    %682 = vperm.xlu0 %681, %v675
    %v683 = vpop.permute.xlu0 %682
    %684 = vset.pattern.permute.xlu0 0
    %685 = vperm.xlu0 %684, %v676
    %v686 = vpop.permute.xlu0 %685
    %687 = vset.pattern.permute.xlu0 0
    %688 = vperm.xlu0 %687, %v677
    %v689 = vpop.permute.xlu0 %688
    %vm690 = vcmp.eq.s32.totalorder %v671, %v680
    %vm691 = vcmp.eq.s32.totalorder %v672, %v680
    %vm692 = vcmp.eq.s32.totalorder %v673, %v680
    %vm693 = vcmp.eq.s32.totalorder %v671, %v683
    %vm694 = vcmp.eq.s32.totalorder %v672, %v683
    %vm695 = vcmp.eq.s32.totalorder %v673, %v683
    %vm696 = vcmp.eq.s32.totalorder %v671, %v686
    %vm697 = vcmp.eq.s32.totalorder %v672, %v686
    %vm698 = vcmp.eq.s32.totalorder %v673, %v686
    %vm699 = vcmp.eq.s32.totalorder %v671, %v689
    %vm700 = vcmp.eq.s32.totalorder %v672, %v689
    %vm701 = vcmp.eq.s32.totalorder %v673, %v689
    %v702 = vld [vmem:[#allocation4] sm:$0xff]
    %v703 = vld [vmem:[#allocation4 + $0x8] sm:$0xff]
    %v704 = vld [vmem:[#allocation4 + $0x10] sm:$0xff]
    %v705 = vld [vmem:[#allocation4 + $0x18] sm:$0xff]
    %v706 = vsel %vm690, %v558, 0.0
    %v707 = vsel %vm691, %v560, 0.0
    %v708 = vsel %vm692, %v647, 0.0
    %v709 = vsel %vm693, %v564, 0.0
    %v710 = vsel %vm694, %v566, 0.0
    %v711 = vsel %vm695, %v652, 0.0
    %v712 = vsel %vm696, %v570, 0.0
    %v713 = vsel %vm697, %v572, 0.0
    %v714 = vsel %vm698, %v657, 0.0
    %v715 = vsel %vm699, %v576, 0.0
    %v716 = vsel %vm700, %v578, 0.0
    %v717 = vsel %vm701, %v662, 0.0
    %v718 = vadd.f32 %v706, %v707
    %v719 = vadd.f32 %v718, %v708
    %720 = vadd.xlane.f32.xlu0 %v719
    %v721 = vpop.xlane.xlu0 %720
    %v722 = vadd.f32 %v709, %v710
    %v723 = vadd.f32 %v722, %v711
    %724 = vadd.xlane.f32.xlu0 %v723
    %v725 = vpop.xlane.xlu0 %724
    %v726 = vadd.f32 %v712, %v713
    %v727 = vadd.f32 %v726, %v714
    %728 = vadd.xlane.f32.xlu0 %v727
    %v729 = vpop.xlane.xlu0 %728
    %v730 = vadd.f32 %v715, %v716
    %v731 = vadd.f32 %v730, %v717
    %732 = vadd.xlane.f32.xlu0 %v731
    %v733 = vpop.xlane.xlu0 %732
    %v734 = vadd.f32 %v702, %v721
    %v735 = vadd.f32 %v703, %v725
    %v736 = vadd.f32 %v704, %v729
    %v737 = vadd.f32 %v705, %v733
    %vm738 = vcmask 7168
    %739 = vst.msk [vmem:[#allocation4] sm:$0xff] %vm738, %v734
    %740 = vst.msk [vmem:[#allocation4 + $0x8] sm:$0xff] %vm738, %v735
    %741 = vst.msk [vmem:[#allocation4 + $0x10] sm:$0xff] %vm738, %v736
    %742 = vst.msk [vmem:[#allocation4 + $0x18] sm:$0xff] %vm738, %v737
    %v743 = vld [vmem:[#allocation2] sm:$0xff]
    %v744 = vld [vmem:[#allocation2 + $0x8] sm:$0xff]
    %v745 = vld [vmem:[#allocation2 + $0x10] sm:$0xff]
    %v746 = vld [vmem:[#allocation2 + $0x18] sm:$0xff]
    %v747 = vmax.f32 %v558, %v560
    %v748 = vmax.f32 %v747, %v647
    %749 = vmax.xlane.f32.xlu0 %v748
    %v750 = vpop.xlane.xlu0 %749
    %v751 = vmax.f32 %v564, %v566
    %v752 = vmax.f32 %v751, %v652
    %753 = vmax.xlane.f32.xlu0 %v752
    %v754 = vpop.xlane.xlu0 %753
    %v755 = vmax.f32 %v570, %v572
    %v756 = vmax.f32 %v755, %v657
    %757 = vmax.xlane.f32.xlu0 %v756
    %v758 = vpop.xlane.xlu0 %757
    %v759 = vmax.f32 %v576, %v578
    %v760 = vmax.f32 %v759, %v662
    %761 = vmax.xlane.f32.xlu0 %v760
    %v762 = vpop.xlane.xlu0 %761
    %v763 = vmax.f32 %v743, %v750
    %v764 = vmax.f32 %v744, %v754
    %v765 = vmax.f32 %v745, %v758
    %v766 = vmax.f32 %v746, %v762
    %v767 = vld [vmem:[#allocation3] sm:$0xff]
    %v768 = vld [vmem:[#allocation3 + $0x8] sm:$0xff]
    %v769 = vld [vmem:[#allocation3 + $0x10] sm:$0xff]
    %v770 = vld [vmem:[#allocation3 + $0x18] sm:$0xff]
    %v771 = vsub.f32 %v743, %v763
    %v772 = vsub.f32 %v744, %v764
    %v773 = vsub.f32 %v745, %v765
    %v774 = vsub.f32 %v746, %v766
    %v775 = vmul.f32 %v771, 1.442695
    %v776 = vpow.pop %v775
    %v777 = vmul.f32 %v772, 1.442695
    %v778 = vpow.pop %v777
    %v779 = vmul.f32 %v773, 1.442695
    %v780 = vpow.pop %v779
    %v781 = vmul.f32 %v774, 1.442695
    %v782 = vpow.pop %v781
    %v783 = vmul.f32 %v767, %v776
    %v784 = vmul.f32 %v768, %v778
    %v785 = vmul.f32 %v769, %v780
    %v786 = vmul.f32 %v770, %v782
    %788 = vset.pattern.permute.xlu0 0
    %789 = vperm.xlu0 %788, %v763
    %v790 = vpop.permute.xlu0 %789
    %793 = vset.pattern.permute.xlu0 0
    %794 = vperm.xlu0 %793, %v764
    %v795 = vpop.permute.xlu0 %794
    %798 = vset.pattern.permute.xlu0 0
    %799 = vperm.xlu0 %798, %v765
    %v800 = vpop.permute.xlu0 %799
    %803 = vset.pattern.permute.xlu0 0
    %804 = vperm.xlu0 %803, %v766
    %v805 = vpop.permute.xlu0 %804
    %v807 = vsub.f32 %v558, %v790
    %v808 = vsub.f32 %v560, %v790
    %v809 = vsub.f32 %v647, %v790
    %v810 = vsub.f32 %v564, %v795
    %v811 = vsub.f32 %v566, %v795
    %v812 = vsub.f32 %v652, %v795
    %v813 = vsub.f32 %v570, %v800
    %v814 = vsub.f32 %v572, %v800
    %v815 = vsub.f32 %v657, %v800
    %v816 = vsub.f32 %v576, %v805
    %v817 = vsub.f32 %v578, %v805
    %v818 = vsub.f32 %v662, %v805
    %v819 = vmul.f32 %v807, 1.442695
    %v820 = vpow.pop %v819
    %v821 = vmul.f32 %v808, 1.442695
    %v822 = vpow.pop %v821
    %v823 = vmul.f32 %v809, 1.442695
    %v824 = vpow.pop %v823
    %v825 = vmul.f32 %v810, 1.442695
    %v826 = vpow.pop %v825
    %v827 = vmul.f32 %v811, 1.442695
    %v828 = vpow.pop %v827
    %v829 = vmul.f32 %v812, 1.442695
    %v830 = vpow.pop %v829
    %v831 = vmul.f32 %v813, 1.442695
    %v832 = vpow.pop %v831
    %v833 = vmul.f32 %v814, 1.442695
    %v834 = vpow.pop %v833
    %v835 = vmul.f32 %v815, 1.442695
    %v836 = vpow.pop %v835
    %v837 = vmul.f32 %v816, 1.442695
    %v838 = vpow.pop %v837
    %v839 = vmul.f32 %v817, 1.442695
    %v840 = vpow.pop %v839
    %v841 = vmul.f32 %v818, 1.442695
    %v842 = vpow.pop %v841
    %v843 = vadd.f32 %v820, %v822
    %v844 = vadd.f32 %v843, %v824
    %845 = vadd.xlane.f32.xlu0 %v844
    %v846 = vpop.xlane.xlu0 %845
    %v847 = vadd.f32 %v826, %v828
    %v848 = vadd.f32 %v847, %v830
    %849 = vadd.xlane.f32.xlu0 %v848
    %v850 = vpop.xlane.xlu0 %849
    %v851 = vadd.f32 %v832, %v834
    %v852 = vadd.f32 %v851, %v836
    %853 = vadd.xlane.f32.xlu0 %v852
    %v854 = vpop.xlane.xlu0 %853
    %v855 = vadd.f32 %v838, %v840
    %v856 = vadd.f32 %v855, %v842
    %857 = vadd.xlane.f32.xlu0 %v856
    %v858 = vpop.xlane.xlu0 %857
    %v859 = vadd.f32 %v783, %v846
    %v860 = vadd.f32 %v784, %v850
    %v861 = vadd.f32 %v785, %v854
    %v862 = vadd.f32 %v786, %v858
    %863 = vst.msk [vmem:[#allocation3] sm:$0xff] %vm738, %v859
    %864 = vst.msk [vmem:[#allocation3 + $0x8] sm:$0xff] %vm738, %v860
    %865 = vst.msk [vmem:[#allocation3 + $0x10] sm:$0xff] %vm738, %v861
    %866 = vst.msk [vmem:[#allocation3 + $0x18] sm:$0xff] %vm738, %v862
    %867 = vst.msk [vmem:[#allocation2] sm:$0xff] %vm738, %v763
    %868 = vst.msk [vmem:[#allocation2 + $0x8] sm:$0xff] %vm738, %v764
    %869 = vst.msk [vmem:[#allocation2 + $0x10] sm:$0xff] %vm738, %v765
    %870 = vst.msk [vmem:[#allocation2 + $0x18] sm:$0xff] %vm738, %v766
    // Predicated region
    $region30: #{tpu_custom_call.1} parent=1 // pred_check
      %p871 = pneg %p29
    $region31: #{tpu_custom_call.1} parent=1 // pred_check_branch
      %873 = sbr.rel (%p871) target = $region33
    $region32: #{tpu_custom_call.1} parent=1 // pred_region
      %v874 = vld [vmem:[#allocation2] sm:$0xff]
      %v875 = vld [vmem:[#allocation2 + $0x8] sm:$0xff]
      %v876 = vld [vmem:[#allocation2 + $0x10] sm:$0xff]
      %v877 = vld [vmem:[#allocation2 + $0x18] sm:$0xff]
      %v878 = vld [vmem:[#allocation3] sm:$0xff]
      %v879 = vld [vmem:[#allocation3 + $0x8] sm:$0xff]
      %v880 = vld [vmem:[#allocation3 + $0x10] sm:$0xff]
      %v881 = vld [vmem:[#allocation3 + $0x18] sm:$0xff]
      %v882 = vlog2.pop %v878
      %v883 = vmul.f32 %v882, 0.6931472
      %v884 = vlog2.pop %v879
      %v885 = vmul.f32 %v884, 0.6931472
      %v886 = vlog2.pop %v880
      %v887 = vmul.f32 %v886, 0.6931472
      %v888 = vlog2.pop %v881
      %v889 = vmul.f32 %v888, 0.6931472
      %v890 = vadd.f32 %v874, %v883
      %v891 = vadd.f32 %v875, %v885
      %v892 = vadd.f32 %v876, %v887
      %v893 = vadd.f32 %v877, %v889
      %v894 = vld [vmem:[#allocation4] sm:$0xff]
      %v895 = vld [vmem:[#allocation4 + $0x8] sm:$0xff]
      %v896 = vld [vmem:[#allocation4 + $0x10] sm:$0xff]
      %v897 = vld [vmem:[#allocation4 + $0x18] sm:$0xff]
      %v898 = vsub.f32 %v890, %v894
      %v899 = vsub.f32 %v891, %v895
      %v900 = vsub.f32 %v892, %v896
      %v901 = vsub.f32 %v893, %v897
      %v902 = vsel %vm738, %v898, 0.0
      %v903 = vsel %vm738, %v899, 0.0
      %v904 = vadd.f32 %v902, %v903
      %v905 = vsel %vm738, %v900, 0.0
      %v906 = vadd.f32 %v904, %v905
      %v907 = vsel %vm738, %v901, 0.0
      %v908 = vadd.f32 %v906, %v907
      %909 = vadd.xlane.f32.xlu0 %v908
      %v910 = vpop.xlane.xlu0 %909
      %v911 = vrot.slane %v910, 4
      %v912 = vadd.f32 %v910, %v911
      %v913 = vrot.slane %v912, 2
      %v914 = vadd.f32 %v912, %v913
      %v915 = vrot.slane %v914, 1
      %v916 = vadd.f32 %v914, %v915
      %s917 = vtos %v916
      %v918 = vstv %s917
      %v919 = vrcp.pop 32.0
      %v920 = vmul.f32 %v918, %v919
      %vm921 = vcmp.ge.f32.partialorder %v894, %v874
      %vm922 = vcmp.ge.f32.partialorder %v895, %v875
      %vm923 = vcmp.ge.f32.partialorder %v896, %v876
      %vm924 = vcmp.ge.f32.partialorder %v897, %v877
      %v925 = vsel %vm921, 1, 0
      %v926 = vsel %vm922, 1, 0
      %v927 = vsel %vm923, 1, 0
      %v928 = vsel %vm924, 1, 0
      %v929 = vcvt.s32.f32 %v925
      %v930 = vcvt.s32.f32 %v926
      %v931 = vcvt.s32.f32 %v927
      %v932 = vcvt.s32.f32 %v928
      %v933 = vsel %vm738, %v929, 0.0
      %v934 = vsel %vm738, %v930, 0.0
      %v935 = vadd.f32 %v933, %v934
      %v936 = vsel %vm738, %v931, 0.0
      %v937 = vadd.f32 %v935, %v936
      %v938 = vsel %vm738, %v932, 0.0
      %v939 = vadd.f32 %v937, %v938
      %940 = vadd.xlane.f32.xlu0 %v939
      %v941 = vpop.xlane.xlu0 %940
      %v942 = vrot.slane %v941, 4
      %v943 = vadd.f32 %v941, %v942
      %v944 = vrot.slane %v943, 2
      %v945 = vadd.f32 %v943, %v944
      %v946 = vrot.slane %v945, 1
      %v947 = vadd.f32 %v945, %v946
      %s948 = vtos %v947
      %v949 = vstv %s948
      %v950 = vmul.f32 %v949, 3.125
      %vm951 = vcmask 0
      %952 = vst.msk [vmem:[#allocation10] sm:$0x1] %vm951, %v950
      %v953 = vld [vmem:[#allocation5] sm:$0x1]
      %v954 = vadd.f32 %v920, %v953
      %955 = vst.msk [vmem:[#allocation8] sm:$0x1] %vm951, %v954
    $region33: #{tpu_custom_call.1} parent=1 // pred_fallthru
      _
    // Predicated region
    $region34: #{tpu_custom_call.1} parent=1 // pred_check
      _
    $region35: #{tpu_custom_call.1} parent=1 // pred_check_branch
      %957 = sbr.rel (0) target = $region37
    $region36: #{tpu_custom_call.1} parent=1 // pred_region
      %s959 = ssub.s32 16, 16
      %960 = vsyncadd [#allocation9], %s959
      %s962 = sshll.u32 [#allocation8], 4
      %s963 = int_to_ptr.vmem [resolvable:$true] %s962
      %965 = dma.vmem_to_hbm [thread:$0]  %s963, 16, %s6, [#allocation9]
    $region37: #{tpu_custom_call.1} parent=1 // pred_fallthru
      _
    // Predicated region
    $region38: #{tpu_custom_call.1} parent=1 // pred_check
      _
    $region39: #{tpu_custom_call.1} parent=1 // pred_check_branch
      %967 = sbr.rel (0) target = $region41
    $region40: #{tpu_custom_call.1} parent=1 // pred_region
      %s969 = ssub.s32 16, 16
      %970 = vsyncadd [#allocation11], %s969
      %s972 = sshll.u32 [#allocation10], 4
      %s973 = int_to_ptr.vmem [resolvable:$true] %s972
      %975 = dma.vmem_to_hbm [thread:$0]  %s973, 16, %s7, [#allocation11]
    $region41: #{tpu_custom_call.1} parent=1 // pred_fallthru
      _
    // Predicated region
    $region42: #{tpu_custom_call.1} parent=1 // pred_check
      _
    $region43: #{tpu_custom_call.1} parent=1 // pred_check_branch
      %977 = sbr.rel (0) target = $region45
    $region44: #{tpu_custom_call.1} parent=1 // pred_region
      %978 = dma.done [#allocation9], 16
    $region45: #{tpu_custom_call.1} parent=1 // pred_fallthru
      _
    // Predicated region
    $region46: #{tpu_custom_call.1} parent=1 // pred_check
      _
    $region47: #{tpu_custom_call.1} parent=1 // pred_check_branch
      %980 = sbr.rel (0) target = $region49
    $region48: #{tpu_custom_call.1} parent=1 // pred_region
      %981 = dma.done [#allocation11], 16
    $region49: #{tpu_custom_call.1} parent=1 // pred_fallthru
      _
    %982 = vsyncpa [#allocation9], 1
    %983 = vsyncpa [#allocation11], 1

</llo_original>
